<compile_context>
chip_gen: v6e
topology: v6e:2x2x1
jax: 0.10.0
libtpu: 0.0.40
codegen_flags: <defaults>
</compile_context>

<pallas_src>
import jax
import jax.numpy as jnp
from jax import lax
from jax.experimental import pallas as pl
from jax.experimental.pallas import tpu as pltpu


def router_kernel(x_ref, w_hbm_ref, b_ref, o_ref, w_vmem, w_sem):
    # x_ref : (tm, H) row tile of the flattened input (VMEM, pipelined)
    # w_hbm : (H, E)  transposed Linear weight, left in HBM (memory_space=ANY)
    # b_ref : (1, E)  bias, f32, resident
    # o_ref : (tm, E) softmax probabilities
    # w_vmem: (H, E)  single-buffered VMEM scratch for the weight
    # w_sem : DMA semaphore for the one-time weight copy

    # Copy the grid-invariant weight HBM -> VMEM exactly once; the scratch
    # persists across grid iterations, so later steps reuse it for free.
    @pl.when(pl.program_id(0) == 0)
    def _():
        cp = pltpu.make_async_copy(w_hbm_ref, w_vmem, w_sem)
        cp.start()
        cp.wait()

    x = x_ref[...]                                   # (tm, H)

    # logits = x @ W^T: contract H (axis 1 of x) with H (axis 0 of W^T).
    # RHS already has K=H on sublanes / N=E on lanes -> no per-step transpose.
    logits = lax.dot_general(
        x,
        w_vmem[...],
        dimension_numbers=(((1,), (0,)), ((), ())),
        preferred_element_type=jnp.float32,
    )                                                # (tm, E), f32 accumulation

    logits = logits + b_ref[...]                     # bias already f32

    # Numerically stable softmax along the expert axis.  e/s is rewritten as
    # e * (1/s): the per-row reciprocal runs on the otherwise-idle EUP slot.
    m = jnp.max(logits, axis=-1, keepdims=True)
    e = jnp.exp(logits - m)
    s = jnp.sum(e, axis=-1, keepdims=True)
    probs = e * pl.reciprocal(s)                     # exact (approx=False default)

    o_ref[...] = probs.astype(o_ref.dtype)


def _vmem_capacity_bytes():
    """Physical VMEM per TensorCore; conservative (v7x-sized) fallback."""
    try:
        return int(pltpu.get_tpu_info().vmem_capacity_bytes)
    except Exception:
        return 64 * 1024 * 1024


def router_forward(x, w, b, *, tm=None):
    """x: (..., hidden); w: (num_experts, hidden); b: (num_experts,)."""
    orig_shape = x.shape
    H = orig_shape[-1]
    E = w.shape[0]
    M = 1
    for d in orig_shape[:-1]:
        M *= d

    x2 = x.reshape(M, H)
    wt = jnp.transpose(w)                        # (H, E): one-time tiny XLA op
    b2 = b.astype(jnp.float32).reshape(1, E)     # pre-cast bias once

    itemsize = jnp.dtype(x.dtype).itemsize
    sublane = 16 if itemsize == 2 else 8

    # Generation-aware VMEM sizing.
    vmem_cap = _vmem_capacity_bytes()
    small_vmem = vmem_cap <= 64 * 1024 * 1024            # v7x-like part
    if small_vmem:
        budget, limit_cap, tm_cap, min_grid = (40 << 20, 56 << 20, 1024, 4)
    else:                                                # v5e / v6e (128 MiB)
        budget, limit_cap, tm_cap, min_grid = (96 << 20, 112 << 20, 2048, 2)

    # Degenerate tiny-M corner: keep block rows <= (padded) array rows.
    M_eff = M
    if M < sublane:
        x2 = jnp.pad(x2, ((0, sublane - M), (0, 0)))
        M_eff = sublane

    lane_E = max(E, 128)                     # expert axis pads to 128 lanes
    w_scratch_bytes = H * lane_E * jnp.dtype(w.dtype).itemsize   # single buffer
    # Per-row VMEM cost: double-buffered x tile + double-buffered out tile.
    row_bytes = 2 * H * itemsize + 2 * lane_E * itemsize

    if tm is None:
        avail = max(budget - w_scratch_bytes, sublane * row_bytes)
        tm = (avail // row_bytes) // sublane * sublane
        tm = int(max(sublane, min(tm_cap, tm)))

    # Never exceed the problem size (keep a sublane multiple <= M_eff).
    tm = max(sublane, min(tm, (M_eff // sublane) * sublane))

    # Keep at least `min_grid` grid steps when M allows: on v7x the "parallel"
    # axis shards across both TensorCores; elsewhere it gives the pipeline
    # something to overlap.  Costs at most a few extra ~0.35us steps.
    if min_grid > 1:
        tm_split = (M_eff // min_grid) // sublane * sublane
        if tm_split >= sublane:
            tm = min(tm, tm_split)

    grid_m = pl.cdiv(M_eff, tm)

    est_bytes = (2 * tm * H * itemsize          # double-buffered x tile
                 + 2 * tm * lane_E * itemsize   # double-buffered out tile
                 + w_scratch_bytes              # single-buffered weight
                 + (1 << 20))                   # slack for internal scratch
    cp_kwargs = dict(dimension_semantics=("parallel",))
    if est_bytes > 16 * 1024 * 1024:            # above smallest scoped default
        cp_kwargs["vmem_limit_bytes"] = int(min(max(est_bytes * 5 // 4,
                                                    32 * 1024 * 1024),
                                                limit_cap))

    out = pl.pallas_call(
        router_kernel,
        out_shape=jax.ShapeDtypeStruct((M_eff, E), x.dtype),
        grid_spec=pltpu.PrefetchScalarGridSpec(
            num_scalar_prefetch=0,
            grid=(grid_m,),
            in_specs=[
                pl.BlockSpec((tm, H), lambda i: (i, 0)),   # row tile of x
                pl.BlockSpec(memory_space=pl.ANY),         # W^T stays in HBM
                pl.BlockSpec((1, E), lambda i: (0, 0)),    # bias, resident
            ],
            out_specs=pl.BlockSpec((tm, E), lambda i: (i, 0)),
            scratch_shapes=[
                pltpu.VMEM((H, E), w.dtype),               # single-buffered W^T
                pltpu.SemaphoreType.DMA,
            ],
        ),
        compiler_params=pltpu.CompilerParams(**cp_kwargs),
    )(x2, wt, b2)

    if M_eff != M:
        out = out[:M]
    return out.reshape(orig_shape[:-1] + (E,))


if __name__ == "__main__":
    batch, seq, hidden, num_experts = 2, 8, 32, 8

    key = jax.random.PRNGKey(0)
    kx, kw, kb = jax.random.split(key, 3)

    x = jax.random.normal(kx, (batch, seq, hidden), dtype=jnp.float32)
    # Deterministic synthetic params with the same shapes as nn.Linear's.
    w = jax.random.normal(kw, (num_experts, hidden), dtype=jnp.float32) * 0.1
    b = jax.random.normal(kb, (num_experts,), dtype=jnp.float32) * 0.1

    out = router_forward(x, w, b)
    out = jax.block_until_ready(out)

    # Pure-JAX reference of the PyTorch forward: softmax(x @ W.T + b, dim=-1)
    ref = jax.nn.softmax(x @ w.T + b, axis=-1)
    assert out.shape == (batch, seq, num_experts)
    assert jnp.allclose(out, ref, atol=1e-5, rtol=1e-5), "mismatch vs reference"
    assert jnp.allclose(jnp.sum(out, axis=-1), 1.0, atol=1e-5), "rows must sum to 1"

    print("KERNEL_OK")
</pallas_src>

<mosaic_0001>
module attributes {stable_mosaic.version = 11 : i64} {
  func.func @router_kernel(%arg0: i32, %arg1: memref<16x32xf32, #tpu.memory_space<vmem>>, %arg2: memref<32x8xf32, #tpu.memory_space<any>>, %arg3: memref<1x8xf32, #tpu.memory_space<vmem>>, %arg4: memref<16x8xf32, #tpu.memory_space<vmem>>, %arg5: memref<32x8xf32, #tpu.memory_space<vmem>>, %arg6: memref<!tpu.dma_semaphore, #tpu.memory_space<semaphore_mem>>) attributes {dimension_semantics = [#tpu.dimension_semantics<parallel>], iteration_bounds = array<i64: 1>, scalar_prefetch = 0 : i64, scratch_operands = 2 : i64, tpu.core_type = #tpu.core_type<tc>, window_params = [{transform_indices = @transform_0, window_bounds = array<i64: 16, 32>}, {}, {pipeline_mode = #tpu.pipeline_mode<synchronous>, transform_indices = @transform_2, window_bounds = array<i64: 1, 8>}, {transform_indices = @transform_3, window_bounds = array<i64: 16, 8>}]} {
    %c0_i32 = arith.constant 0 : i32
    %0 = arith.cmpi eq, %arg0, %c0_i32 : i32
    %1 = arith.extui %0 : i1 to i32
    %c0_i32_0 = arith.constant 0 : i32
    %2 = arith.cmpi ne, %1, %c0_i32_0 : i32
    scf.if %2 {
      tpu.enqueue_dma source(%arg2 : memref<32x8xf32, #tpu.memory_space<any>>) target(%arg5 : memref<32x8xf32, #tpu.memory_space<vmem>>) target_semaphore(%arg6 : memref<!tpu.dma_semaphore, #tpu.memory_space<semaphore_mem>>)
      tpu.wait_dma2 semaphore(%arg6 : memref<!tpu.dma_semaphore, #tpu.memory_space<semaphore_mem>>) src(%arg2 : memref<32x8xf32, #tpu.memory_space<any>>) dst(%arg5 : memref<32x8xf32, #tpu.memory_space<vmem>>)
    } else {
    }
    %c0 = arith.constant 0 : index
    %c0_1 = arith.constant 0 : index
    %3 = vector.load %arg1[%c0, %c0_1] : memref<16x32xf32, #tpu.memory_space<vmem>>, vector<16x32xf32>
    %c0_2 = arith.constant 0 : index
    %c0_3 = arith.constant 0 : index
    %4 = vector.load %arg5[%c0_2, %c0_3] : memref<32x8xf32, #tpu.memory_space<vmem>>, vector<32x8xf32>
    %cst = arith.constant dense<0.000000e+00> : vector<16x8xf32>
    %5 = tpu.matmul %3, %4, %cst {dimension_numbers = #tpu.dot_dimension_numbers<[1], [0], [0], [1], [0, 0, 1, 1], [], []>} : vector<16x32xf32>, vector<32x8xf32>, vector<16x8xf32> -> vector<16x8xf32>
    %c0_4 = arith.constant 0 : index
    %c0_5 = arith.constant 0 : index
    %6 = vector.load %arg3[%c0_4, %c0_5] : memref<1x8xf32, #tpu.memory_space<vmem>>, vector<1x8xf32>
    %7 = vector.broadcast %6 : vector<1x8xf32> to vector<16x8xf32>
    %8 = arith.addf %5, %7 : vector<16x8xf32>
    %cst_6 = arith.constant dense<0xFF800000> : vector<16xf32>
    %9 = vector.multi_reduction <maximumf>, %8, %cst_6 [1] : vector<16x8xf32> to vector<16xf32>
    %10 = vector.shape_cast %9 : vector<16xf32> to vector<16x1xf32>
    %11 = vector.broadcast %10 : vector<16x1xf32> to vector<16x8xf32>
    %12 = arith.subf %8, %11 : vector<16x8xf32>
    %13 = math.exp %12 : vector<16x8xf32>
    %cst_7 = arith.constant dense<0.000000e+00> : vector<16xf32>
    %14 = vector.multi_reduction <add>, %13, %cst_7 [1] : vector<16x8xf32> to vector<16xf32>
    %15 = vector.shape_cast %14 : vector<16xf32> to vector<16x1xf32>
    %16 = tpu.reciprocal %15 : vector<16x1xf32> -> vector<16x1xf32>
    %17 = vector.broadcast %16 : vector<16x1xf32> to vector<16x8xf32>
    %18 = arith.mulf %13, %17 : vector<16x8xf32>
    %c0_8 = arith.constant 0 : index
    %c0_9 = arith.constant 0 : index
    %19 = vector.load %arg4[%c0_8, %c0_9] : memref<16x8xf32, #tpu.memory_space<vmem>>, vector<16x8xf32>
    tpu.vector_store %arg4[%c0_8, %c0_9], %18 {strides = array<i32>} : memref<16x8xf32, #tpu.memory_space<vmem>>, vector<16x8xf32>,
    return
  }
  func.func @transform_0(%arg0: i32) -> (i32, i32) {
    %c0_i32 = arith.constant 0 : i32
    %c0_i32_0 = arith.constant 0 : i32
    return %arg0, %c0_i32 : i32, i32
  }
  func.func @transform_2(%arg0: i32) -> (i32, i32) {
    %c0_i32 = arith.constant 0 : i32
    %c0_i32_0 = arith.constant 0 : i32
    %c0_i32_1 = arith.constant 0 : i32
    return %c0_i32, %c0_i32_0 : i32, i32
  }
  func.func @transform_3(%arg0: i32) -> (i32, i32) {
    %c0_i32 = arith.constant 0 : i32
    %c0_i32_0 = arith.constant 0 : i32
    return %arg0, %c0_i32 : i32, i32
  }
}

</mosaic_0001>

<llo_original>
// kernel: tpu_custom_call.1
$region0: #{tpu_custom_call.1}
  #allocation0 [shape = 'u32[]', space=smem, size = 0x4, offset = 0x4, fixed_abs, tag = 'smem constant byte address 0x4 - core index']
  #allocation1 [shape = 'u32[144,128]{1,0:T(1,128)}', space=vmem, size = 0x12000, scoped, tag = 'internal scratch']
  #allocation2 [shape = 'f32[32,8]{1,0:T(8,128)}', space=vmem, size = 0x4000, scoped, tag = 'scratch operand']
  #allocation3 [shape = 's32[1]{0}', space=sflag, size = 0x4, scoped, tag = 'scratch operand']
  #allocation4 [shape = 's32[]', space=sflag, size = 0x4, offset = 0, fixed_abs, tag = 'sflag constant byte address 0x0 - dummy sync flag']
  %s0 = inlined_call_operand.vmem [shape: f32[16,32], index: 0, kind: input, shape index: {}]
  %s1 = inlined_call_operand.vmem [shape: f32[32,8], index: 1, kind: input, shape index: {}]
  %s2 = inlined_call_operand.vmem [shape: f32[1,8], index: 2, kind: input, shape index: {}]
  %s3 = inlined_call_operand.vmem [shape: f32[16,8], index: 3, kind: output, shape index: {}]
  %s4 = sld [smem:[#allocation0]]
  $region56: #{tpu_custom_call.1} parent=0
    _
  %s6 = ssub.s32 1, %s4
  %s7 = scalar_select 0, %s6, %s4
  // Predicated region
  $region2: #{tpu_custom_call.1} parent=0 // pred_check
    _
  $region3: #{tpu_custom_call.1} parent=0 // pred_check_branch
    %9 = sbr.rel (0) target = $region5
  $region4: #{tpu_custom_call.1} parent=0 // pred_region
    _
  $region5: #{tpu_custom_call.1} parent=0 // pred_fallthru
    _
  // Predicated region
  $region6: #{tpu_custom_call.1} parent=0 // pred_check
    _
  $region7: #{tpu_custom_call.1} parent=0 // pred_check_branch
    %11 = sbr.rel (0) target = $region9
  $region8: #{tpu_custom_call.1} parent=0 // pred_region
    _
  $region9: #{tpu_custom_call.1} parent=0 // pred_fallthru
    _
  %p12 = scmp.eq.s32.totalorder 0, 0
  // Predicated region
  $region10: #{tpu_custom_call.1} parent=0 // pred_check
    %p13 = pneg %p12
  $region11: #{tpu_custom_call.1} parent=0 // pred_check_branch
    %15 = sbr.rel (%p13) target = $region13
  $region12: #{tpu_custom_call.1} parent=0 // pred_region
    %p17 = scmp.lt.u32.totalorder 32, 8
    %p18 = pneg %p17
    // Predicated region
    $region14: #{tpu_custom_call.1} parent=12 // pred_check
      _
    $region15: #{tpu_custom_call.1} parent=12 // pred_check_branch
      %20 = sbr.rel (%p17) target = $region17
    $region16: #{tpu_custom_call.1} parent=12 // pred_region
      %s36 = sand.u32 32, 7
      %p37 = scmp.eq.s32.totalorder %s36, 0
      // Predicated region
      $region29: #{tpu_custom_call.1} parent=16 // pred_check
        %p38 = pneg %p37
      $region30: #{tpu_custom_call.1} parent=16 // pred_check_branch
        %40 = sbr.rel (%p38) target = $region32
      $region31: #{tpu_custom_call.1} parent=16 // pred_region
        loop: start=0, step=1, limit=1
        $region33: #{tpu_custom_call.1} parent=31 // loop_pre_header
          _
        $region34: #{tpu_custom_call.1} parent=31 // loop_header
          %s42 = sphi 0, %s46
          %p43 = scmp.ge.s32.totalorder %s42, 1
          %s47 = sphi %s1, %s1
          %s48 = sphi [#allocation2], [#allocation2]
        $region35: #{tpu_custom_call.1} parent=31 // loop_header_branch
          %45 = sbr.rel (%p43) target = $region39
        $region36: #{tpu_custom_call.1} parent=31 // loop_body
          %v49 = vld [vmem:[%s47] sm:$0xff]
          %50 = vst [vmem:[%s48] sm:$0xff] %v49
          %v51 = vld [vmem:[%s47 + $0x8] sm:$0xff]
          %52 = vst [vmem:[%s48 + $0x8] sm:$0xff] %v51
          %v53 = vld [vmem:[%s47 + $0x10] sm:$0xff]
          %54 = vst [vmem:[%s48 + $0x10] sm:$0xff] %v53
          %v55 = vld [vmem:[%s47 + $0x18] sm:$0xff]
          %56 = vst [vmem:[%s48 + $0x18] sm:$0xff] %v55
        $region37: #{tpu_custom_call.1} parent=31 // loop_footer
          %s46 = sadd.s32 1, %s42
        $region38: #{tpu_custom_call.1} parent=31 // loop_footer_branch
          %41 = sbr.rel target = $region34
        $region39: #{tpu_custom_call.1} parent=31 // loop_exit
          _
      $region32: #{tpu_custom_call.1} parent=16 // pred_fallthru
        _
      %p57 = pneg %p37
      // Predicated region
      $region40: #{tpu_custom_call.1} parent=16 // pred_check
        _
      $region41: #{tpu_custom_call.1} parent=16 // pred_check_branch
        %59 = sbr.rel (%p37) target = $region43
      $region42: #{tpu_custom_call.1} parent=16 // pred_region
        %s60 = sand.u32 32, 7
      $region43: #{tpu_custom_call.1} parent=16 // pred_fallthru
        _
    $region17: #{tpu_custom_call.1} parent=12 // pred_fallthru
      _
    // Predicated region
    $region18: #{tpu_custom_call.1} parent=12 // pred_check
      %p21 = pneg %p17
    $region19: #{tpu_custom_call.1} parent=12 // pred_check_branch
      %23 = sbr.rel (%p21) target = $region21
    $region20: #{tpu_custom_call.1} parent=12 // pred_region
      %s24 = sshll.u32 1, 32
      %s25 = ssub.s32 %s24, 1
      loop: start=0, step=1, limit=1
      $region22: #{tpu_custom_call.1} parent=20 // loop_pre_header
        _
      $region23: #{tpu_custom_call.1} parent=20 // loop_header
        %s27 = sphi 0, %s31
        %p28 = scmp.ge.s32.totalorder %s27, 1
        %s32 = sphi %s1, %s1
        %s33 = sphi [#allocation2], [#allocation2]
      $region24: #{tpu_custom_call.1} parent=20 // loop_header_branch
        %30 = sbr.rel (%p28) target = $region28
      $region25: #{tpu_custom_call.1} parent=20 // loop_body
        %v34 = vld [vmem:[%s32] sm:%s25]
        %35 = vst [vmem:[%s33] sm:%s25] %v34
      $region26: #{tpu_custom_call.1} parent=20 // loop_footer
        %s31 = sadd.s32 1, %s27
      $region27: #{tpu_custom_call.1} parent=20 // loop_footer_branch
        %26 = sbr.rel target = $region23
      $region28: #{tpu_custom_call.1} parent=20 // loop_exit
        _
    $region21: #{tpu_custom_call.1} parent=12 // pred_fallthru
      _
    // Predicated region
    $region44: #{tpu_custom_call.1} parent=12 // pred_check
      _
    $region45: #{tpu_custom_call.1} parent=12 // pred_check_branch
      %63 = sbr.rel (0) target = $region47
    $region46: #{tpu_custom_call.1} parent=12 // pred_region
      %64 = vsyncadd [#allocation3], 512
    $region47: #{tpu_custom_call.1} parent=12 // pred_fallthru
      _
    %s65 = smul.u32 32, 1
    %s66 = sshll.u32 %s65, 4
    %67 = dma.done [#allocation3], %s66
  $region13: #{tpu_custom_call.1} parent=0 // pred_fallthru
    _
  %v68 = vld [vmem:[%s0] sm:$0xff]
  %v69 = vld [vmem:[%s0 + $0x8] sm:$0xff]
  %v70 = vld [vmem:[#allocation2] sm:$0xff]
  %v71 = vld [vmem:[#allocation2 + $0x8] sm:$0xff]
  %v72 = vld [vmem:[#allocation2 + $0x10] sm:$0xff]
  %v73 = vld [vmem:[#allocation2 + $0x18] sm:$0xff]
  %v74 = vld [vmem:[%s2] sm:$0x1]
  %v76 = vlaneseq
  %v77 = vshrl.u32 %v76, 7
  %v78 = vsub.s32 0, %v77
  %v79 = vrot.slane %v74, %v78
  %vm81 = vcmask 261120
  %v83 = vsel %vm81, %v68, 0
  %v86 = vsel %vm81, %v69, 0
  %88 = vmatprep.subr.mxu0 0.0
  %89 = vmatpush1.msra.mxu0 0.0
  %90 = vmatprep.subr.mxu0 0.0
  %91 = vmatpush1.msra.mxu0 0.0
  %92 = vmatprep.subr.mxu0 0.0
  %93 = vmatpush1.msra.mxu0 0.0
  %94 = vmatprep.subr.mxu0 0.0
  %95 = vmatpush1.msra.mxu0 0.0
  %96 = vmatprep.subr.mxu0 0.0
  %97 = vmatpush1.msra.mxu0 0.0
  %98 = vmatprep.subr.mxu0 0.0
  %99 = vmatpush1.msra.mxu0 0.0
  %100 = vmatprep.subr.mxu0 0.0
  %101 = vmatpush1.msra.mxu0 0.0
  %102 = vmatprep.subr.mxu0 0.0
  %103 = vmatpush1.msra.mxu0 0.0
  %104 = vmatprep.subr.mxu0 0.0
  %105 = vmatpush1.msra.mxu0 0.0
  %106 = vmatprep.subr.mxu0 0.0
  %107 = vmatpush1.msra.mxu0 0.0
  %108 = vmatprep.subr.mxu0 0.0
  %109 = vmatpush1.msra.mxu0 0.0
  %110 = vmatprep.subr.mxu0 0.0
  %111 = vmatpush1.msra.mxu0 0.0
  %112 = vmatprep.subr.mxu0 0.0
  %113 = vmatpush1.msra.mxu0 %v73
  %114 = vmatprep.subr.mxu0 0.0
  %115 = vmatpush1.msra.mxu0 %v72
  %116 = vmatprep.subr.mxu0 0.0
  %117 = vmatpush1.msra.mxu0 %v71
  %118 = vmatprep.subr.mxu0 0.0
  %119 = vmatpush1.msra.mxu0 %v70
  %120 = vmatprep.subr.mxu0 0.0
  %121 = vmatpush2.msra.mxu0 0.0
  %122 = vmatprep.subr.mxu0 0.0
  %123 = vmatpush2.msra.mxu0 0.0
  %124 = vmatprep.subr.mxu0 0.0
  %125 = vmatpush2.msra.mxu0 0.0
  %126 = vmatprep.subr.mxu0 0.0
  %127 = vmatpush2.msra.mxu0 0.0
  %128 = vmatprep.subr.mxu0 0.0
  %129 = vmatpush2.msra.mxu0 0.0
  %130 = vmatprep.subr.mxu0 0.0
  %131 = vmatpush2.msra.mxu0 0.0
  %132 = vmatprep.subr.mxu0 0.0
  %133 = vmatpush2.msra.mxu0 0.0
  %134 = vmatprep.subr.mxu0 0.0
  %135 = vmatpush2.msra.mxu0 0.0
  %136 = vmatprep.subr.mxu0 0.0
  %137 = vmatpush2.msra.mxu0 0.0
  %138 = vmatprep.subr.mxu0 0.0
  %139 = vmatpush2.msra.mxu0 0.0
  %140 = vmatprep.subr.mxu0 0.0
  %141 = vmatpush2.msra.mxu0 0.0
  %142 = vmatprep.subr.mxu0 0.0
  %143 = vmatpush2.msra.mxu0 0.0
  %144 = vmatprep.subr.mxu0 0.0
  %145 = vmatpush2.msra.mxu0 0.0
  %146 = vmatprep.subr.mxu0 0.0
  %147 = vmatpush2.msra.mxu0 0.0
  %148 = vmatprep.subr.mxu0 0.0
  %149 = vmatpush2.msra.mxu0 0.0
  %150 = vmatprep.subr.mxu0 0.0
  %151 = vmatpush2.msra.mxu0 0.0
  %152 = vmatprep.mubr.f32.mxu0 0.0
  %153 = vmatmul.mubr.f32.gmra.mxu0 %v83
  %v154 = vpop.f32.mrf.mxu0
  %v155 = vadd.f32 %v79, %v154
  %v156 = vpop.f32.mrf.mxu0
  %157 = vmatprep.mubr.f32.mxu0 0.0
  %158 = vmatmul.mubr.f32.gmra.mxu0 %v86
  %v159 = vpop.f32.mrf.mxu0
  %v160 = vadd.f32 %v79, %v159
  %v161 = vpop.f32.mrf.mxu0
  %162 = vdwg.mxu0
  %vm163 = vcmask 64512
  %v164 = vsel %vm163, %v155, -inf
  %165 = vmax.xlane.f32.xlu0 %v164
  %v166 = vpop.xlane.xlu0 %165
  %v167 = vsel %vm163, %v160, -inf
  %168 = vmax.xlane.f32.xlu0 %v167
  %v169 = vpop.xlane.xlu0 %168
  %v170 = vsub.f32 %v155, %v166
  %v171 = vsub.f32 %v160, %v169
  %v172 = vmul.f32 %v170, 1.442695
  %v173 = vpow.pop %v172
  %v174 = vmul.f32 %v171, 1.442695
  %v175 = vpow.pop %v174
  %v176 = vsel %vm163, %v173, 0.0
  %177 = vadd.xlane.f32.xlu0 %v176
  %v178 = vpop.xlane.xlu0 %177
  %v179 = vsel %vm163, %v175, 0.0
  %180 = vadd.xlane.f32.xlu0 %v179
  %v181 = vpop.xlane.xlu0 %180
  %v182 = vrcp.pop %v178
  %v183 = vrcp.pop %v181
  %v184 = vmul.f32 %v173, %v182
  %v185 = vmul.f32 %v175, %v183
  %186 = vst.msk [vmem:[%s3] sm:$0xff] %vm163, %v184
  %187 = vst.msk [vmem:[%s3 + $0x8] sm:$0xff] %vm163, %v185
  // Predicated region
  $region48: #{tpu_custom_call.1} parent=0 // pred_check
    _
  $region49: #{tpu_custom_call.1} parent=0 // pred_check_branch
    %189 = sbr.rel (0) target = $region51
  $region50: #{tpu_custom_call.1} parent=0 // pred_region
    _
  $region51: #{tpu_custom_call.1} parent=0 // pred_fallthru
    _
  // Predicated region
  $region52: #{tpu_custom_call.1} parent=0 // pred_check
    _
  $region53: #{tpu_custom_call.1} parent=0 // pred_check_branch
    %191 = sbr.rel (0) target = $region55
  $region54: #{tpu_custom_call.1} parent=0 // pred_region
    _
  $region55: #{tpu_custom_call.1} parent=0 // pred_fallthru
    _
  %192 = vsyncmov [#allocation3]
  %s193 = vpop.sfrf %192
  %p194 = scmp.eq.s32.totalorder %s193, 0
  %p195 = pneg %p194
  %197 = shalt.err (%p195)

</llo_original>
